<compile_context>
chip_gen: v6e
topology: v6e:2x2x1
jax: 0.10.0
libtpu: 0.0.40
codegen_flags: <defaults>
</compile_context>

<pallas_src>
import functools

import jax
import jax.numpy as jnp
from jax.experimental import pallas as pl
from jax.experimental.pallas import tpu as pltpu


# ---------------- Pass 1: mean of per-position group std ----------------

def _std_mean_kernel(xg_ref, acc_ref, *, G, M, TM):
    i = pl.program_id(0)

    @pl.when(i == 0)
    def _():
        acc_ref[...] = jnp.zeros_like(acc_ref)

    xg = xg_ref[...].astype(jnp.float32)                        # (G, TM)
    mean = jnp.mean(xg, axis=0, keepdims=True)                  # (1, TM)
    d = xg - mean
    var = jnp.sum(d * d, axis=0, keepdims=True) * (1.0 / (G - 1))   # unbiased (torch default)
    std = jnp.sqrt(var + 1e-8)                                  # (1, TM)

    if M % TM != 0:
        # Mask out-of-range columns of the last (partial) tile.
        col = i * TM + jax.lax.broadcasted_iota(jnp.int32, (1, TM), 1)
        std = jnp.where(col < M, std, 0.0)

    acc_ref[...] += jnp.sum(std, axis=1, keepdims=True)         # (1, 1) accumulator

    @pl.when(i == pl.num_programs(0) - 1)
    def _():
        acc_ref[...] = acc_ref[...] * (1.0 / M)                 # finalize: mean over M


# ---------------- Pass 2: copy x + broadcast scalar into the extra channel ----------------

def _concat_kernel(x_ref, s_ref, o_ref, *, CHW, HW):
    tb = o_ref.shape[0]
    o_ref[:, :CHW] = x_ref[...].astype(o_ref.dtype)             # x channels
    o_ref[:, CHW:] = jnp.broadcast_to(s_ref[...], (tb, HW)).astype(o_ref.dtype)  # std channel


def minibatch_stddev(x, group_size=4):
    B, C, H, W = x.shape
    G = int(group_size)
    assert B % G == 0, "batch must be divisible by group_size"
    total = B * C * H * W
    M = total // G
    CHW = C * H * W
    HW = H * W
    itemsize = jnp.dtype(x.dtype).itemsize

    # ---- Pass 1: scalar = mean over M of per-position std across the G groups ----
    xg = x.reshape(G, M)                       # contiguous reshape (free)
    if M % 128 == 0:
        TM = min(M, 4096)                      # lane-dense, 128-aligned tile
    else:
        TM = M                                 # full-extent fallback (satisfies tiling rule)
    grid1 = (pl.cdiv(M, TM),)

    std_mean = pl.pallas_call(
        functools.partial(_std_mean_kernel, G=G, M=M, TM=TM),
        out_shape=jax.ShapeDtypeStruct((1, 1), jnp.float32),
        grid=grid1,
        in_specs=[pl.BlockSpec((G, TM), lambda i: (0, i))],
        out_specs=pl.BlockSpec((1, 1), lambda i: (0, 0)),       # resident accumulator
        compiler_params=pltpu.CompilerParams(
            dimension_semantics=("arbitrary",)),
        cost_estimate=pl.CostEstimate(
            flops=6 * G * M, transcendentals=M,
            bytes_accessed=itemsize * G * M + 4),
    )(xg)

    # ---- Pass 2: lane-dense copy + std-channel fill in the flattened per-sample layout ----
    x_flat = x.reshape(B, CHW)                 # contiguous reshape (free)
    if B % 8 == 0 and B > 8:
        TB = min(B, 64)
        while B % TB:
            TB -= 8                            # largest multiple-of-8 divisor of B (<= 64)
    else:
        TB = B                                 # full-extent batch block
    grid2 = (B // TB,)

    out_flat = pl.pallas_call(
        functools.partial(_concat_kernel, CHW=CHW, HW=HW),
        out_shape=jax.ShapeDtypeStruct((B, CHW + HW), x.dtype),
        grid=grid2,
        in_specs=[
            pl.BlockSpec((TB, CHW), lambda b: (b, 0)),
            pl.BlockSpec((1, 1), lambda b: (0, 0)),             # scalar, resident every step
        ],
        out_specs=pl.BlockSpec((TB, CHW + HW), lambda b: (b, 0)),
        compiler_params=pltpu.CompilerParams(
            dimension_semantics=("parallel",)),
        cost_estimate=pl.CostEstimate(
            flops=B * HW, transcendentals=0,
            bytes_accessed=itemsize * (B * CHW + B * (CHW + HW))),
    )(x_flat, std_mean)

    # Contiguous reshape: last HW elements of each flat sample become channel C.
    return out_flat.reshape(B, C + 1, H, W)


def minibatch_stddev_ref(x, group_size=4):
    """Pure-JAX reference mirroring the PyTorch forward."""
    B, C, H, W = x.shape
    grouped = x.reshape(group_size, -1)
    std = jnp.sqrt(jnp.var(grouped, axis=0, ddof=1) + 1e-8)     # unbiased, +1e-8
    s = jnp.mean(std)
    std_map = jnp.full((B, 1, H, W), s, dtype=x.dtype)
    return jnp.concatenate([x, std_map], axis=1)


if __name__ == "__main__":
    B, C, H, W = 8, 4, 16, 16          # batch divisible by group_size
    group_size = 4

    key = jax.random.PRNGKey(0)
    x = jax.random.normal(key, (B, C, H, W), dtype=jnp.float32)

    out = minibatch_stddev(x, group_size=group_size)
    out = jax.block_until_ready(out)

    ref = minibatch_stddev_ref(x, group_size=group_size)
    assert out.shape == (B, C + 1, H, W)
    assert jnp.allclose(out, ref, atol=1e-5, rtol=1e-5), "Pallas kernel mismatch vs reference"

    print("KERNEL_OK")
</pallas_src>

<mosaic_0001>
module attributes {stable_mosaic.version = 11 : i64} {
  func.func @_std_mean_kernel(%arg0: i32, %arg1: memref<4x2048xf32, #tpu.memory_space<vmem>>, %arg2: memref<1x1xf32, #tpu.memory_space<vmem>>) attributes {dimension_semantics = [#tpu.dimension_semantics<arbitrary>], iteration_bounds = array<i64: 1>, scalar_prefetch = 0 : i64, scratch_operands = 0 : i64, tpu.core_type = #tpu.core_type<tc>, window_params = [{transform_indices = @transform_0, window_bounds = array<i64: 4, 2048>}, {pipeline_mode = #tpu.pipeline_mode<synchronous>, transform_indices = @transform_1, window_bounds = array<i64: 1, 1>}]} {
    %c0_i32 = arith.constant 0 : i32
    %0 = arith.cmpi eq, %arg0, %c0_i32 : i32
    %1 = arith.extui %0 : i1 to i32
    %c0_i32_0 = arith.constant 0 : i32
    %2 = arith.cmpi ne, %1, %c0_i32_0 : i32
    scf.if %2 {
      %cst_13 = arith.constant 0.000000e+00 : f32
      %26 = vector.broadcast %cst_13 : f32 to vector<1x1xf32>
      %c0_14 = arith.constant 0 : index
      %c0_15 = arith.constant 0 : index
      %27 = vector.load %arg2[%c0_14, %c0_15] : memref<1x1xf32, #tpu.memory_space<vmem>>, vector<1x1xf32>
      tpu.vector_store %arg2[%c0_14, %c0_15], %26 {strides = array<i32>} : memref<1x1xf32, #tpu.memory_space<vmem>>, vector<1x1xf32>,
    } else {
    }
    %c0 = arith.constant 0 : index
    %c0_1 = arith.constant 0 : index
    %3 = vector.load %arg1[%c0, %c0_1] : memref<4x2048xf32, #tpu.memory_space<vmem>>, vector<4x2048xf32>
    %cst = arith.constant dense<0.000000e+00> : vector<2048xf32>
    %4 = vector.multi_reduction <add>, %3, %cst [0] : vector<4x2048xf32> to vector<2048xf32>
    %5 = vector.shape_cast %4 : vector<2048xf32> to vector<1x2048xf32>
    %cst_2 = arith.constant 4.000000e+00 : f32
    %6 = vector.broadcast %cst_2 : f32 to vector<1x2048xf32>
    %7 = arith.divf %5, %6 : vector<1x2048xf32>
    %8 = vector.broadcast %7 : vector<1x2048xf32> to vector<4x2048xf32>
    %9 = arith.subf %3, %8 : vector<4x2048xf32>
    %10 = arith.mulf %9, %9 : vector<4x2048xf32>
    %cst_3 = arith.constant dense<0.000000e+00> : vector<2048xf32>
    %11 = vector.multi_reduction <add>, %10, %cst_3 [0] : vector<4x2048xf32> to vector<2048xf32>
    %12 = vector.shape_cast %11 : vector<2048xf32> to vector<1x2048xf32>
    %cst_4 = arith.constant 0.333333343 : f32
    %13 = vector.broadcast %cst_4 : f32 to vector<1x2048xf32>
    %14 = arith.mulf %12, %13 : vector<1x2048xf32>
    %cst_5 = arith.constant 9.99999993E-9 : f32
    %15 = vector.broadcast %cst_5 : f32 to vector<1x2048xf32>
    %16 = arith.addf %14, %15 : vector<1x2048xf32>
    %17 = math.sqrt %16 : vector<1x2048xf32>
    %c0_6 = arith.constant 0 : index
    %c0_7 = arith.constant 0 : index
    %18 = vector.load %arg2[%c0_6, %c0_7] : memref<1x1xf32, #tpu.memory_space<vmem>>, vector<1x1xf32>
    %cst_8 = arith.constant dense<0.000000e+00> : vector<1xf32>
    %19 = vector.multi_reduction <add>, %17, %cst_8 [1] : vector<1x2048xf32> to vector<1xf32>
    %20 = vector.shape_cast %19 : vector<1xf32> to vector<1x1xf32>
    %21 = arith.addf %18, %20 : vector<1x1xf32>
    %c0_9 = arith.constant 0 : index
    %c0_10 = arith.constant 0 : index
    %22 = vector.load %arg2[%c0_9, %c0_10] : memref<1x1xf32, #tpu.memory_space<vmem>>, vector<1x1xf32>
    tpu.vector_store %arg2[%c0_9, %c0_10], %21 {strides = array<i32>} : memref<1x1xf32, #tpu.memory_space<vmem>>, vector<1x1xf32>,
    %c0_i32_11 = arith.constant 0 : i32
    %23 = arith.cmpi eq, %arg0, %c0_i32_11 : i32
    %24 = arith.extui %23 : i1 to i32
    %c0_i32_12 = arith.constant 0 : i32
    %25 = arith.cmpi ne, %24, %c0_i32_12 : i32
    scf.if %25 {
      %c0_13 = arith.constant 0 : index
      %c0_14 = arith.constant 0 : index
      %26 = vector.load %arg2[%c0_13, %c0_14] : memref<1x1xf32, #tpu.memory_space<vmem>>, vector<1x1xf32>
      %cst_15 = arith.constant 4.8828125E-4 : f32
      %27 = vector.broadcast %cst_15 : f32 to vector<1x1xf32>
      %28 = arith.mulf %26, %27 : vector<1x1xf32>
      %c0_16 = arith.constant 0 : index
      %c0_17 = arith.constant 0 : index
      %29 = vector.load %arg2[%c0_16, %c0_17] : memref<1x1xf32, #tpu.memory_space<vmem>>, vector<1x1xf32>
      tpu.vector_store %arg2[%c0_16, %c0_17], %28 {strides = array<i32>} : memref<1x1xf32, #tpu.memory_space<vmem>>, vector<1x1xf32>,
    } else {
    }
    return
  }
  func.func @transform_0(%arg0: i32) -> (i32, i32) {
    %c0_i32 = arith.constant 0 : i32
    %c0_i32_0 = arith.constant 0 : i32
    return %c0_i32, %arg0 : i32, i32
  }
  func.func @transform_1(%arg0: i32) -> (i32, i32) {
    %c0_i32 = arith.constant 0 : i32
    %c0_i32_0 = arith.constant 0 : i32
    %c0_i32_1 = arith.constant 0 : i32
    return %c0_i32, %c0_i32_0 : i32, i32
  }
}

</mosaic_0001>

<llo_original>
// kernel: tpu_custom_call.1
$region0: #{tpu_custom_call.1}
  #allocation0 [shape = 'u32[]', space=smem, size = 0x4, offset = 0x4, fixed_abs, tag = 'smem constant byte address 0x4 - core index']
  #allocation1 [shape = 'u32[144,128]{1,0:T(1,128)}', space=vmem, size = 0x12000, scoped, tag = 'internal scratch']
  %s0 = inlined_call_operand.hbm [shape: f32[4,2048], index: 0, kind: input, shape index: {}]
  %s1 = inlined_call_operand.hbm [shape: f32[1,1], index: 1, kind: output, shape index: {}]
  %s2 = sld [smem:[#allocation0]]
  $region26: #{tpu_custom_call.1} parent=0
    _
  %s4 = ssub.s32 1, %s2
  %s5 = scalar_select 0, %s4, %s2
  $region1: #{tpu_custom_call.1} parent=0
    #allocation2 [shape = 'u8[32768]{0}', space=vmem, size = 0x8000, scoped, tag = 'input window, operand 0, single buffered']
    #allocation3 [shape = 's32[1]{0}', space=sflag, size = 0x4, scoped, tag = 'scoped memory for tpu_custom_call.1']
    #allocation4 [shape = 's32[1]{0}', space=sflag, size = 0x4, scoped, tag = 'scoped memory for tpu_custom_call.1']
    #allocation5 [shape = 'u8[512]{0}', space=vmem, size = 0x400, scoped, tag = 'output window, operand 0, single buffered']
    %6 = vsyncpa [#allocation3], 0
    %7 = vsyncpa [#allocation4], 0
    // Predicated region
    $region2: #{tpu_custom_call.1} parent=1 // pred_check
      _
    $region3: #{tpu_custom_call.1} parent=1 // pred_check_branch
      %9 = sbr.rel (0) target = $region5
    $region4: #{tpu_custom_call.1} parent=1 // pred_region
      %s11 = ssub.s32 1024, 1024
      %12 = vsyncadd [#allocation3], %s11
      %s14 = sshll.u32 [#allocation2], 4
      %s15 = int_to_ptr.vmem [resolvable:$true] %s14
      %17 = dma.hbm_to_vmem [thread:$0]  %s0, 1024, %s15, [#allocation3]
    $region5: #{tpu_custom_call.1} parent=1 // pred_fallthru
      _
    // Predicated region
    $region6: #{tpu_custom_call.1} parent=1 // pred_check
      _
    $region7: #{tpu_custom_call.1} parent=1 // pred_check_branch
      %19 = sbr.rel (0) target = $region9
    $region8: #{tpu_custom_call.1} parent=1 // pred_region
      %20 = dma.done [#allocation3], 1024
    $region9: #{tpu_custom_call.1} parent=1 // pred_fallthru
      _
    %p21 = scmp.eq.s32.totalorder 0, 0
    // Predicated region
    $region10: #{tpu_custom_call.1} parent=1 // pred_check
      %p22 = pneg %p21
    $region11: #{tpu_custom_call.1} parent=1 // pred_check_branch
      %24 = sbr.rel (%p22) target = $region13
    $region12: #{tpu_custom_call.1} parent=1 // pred_region
      %vm25 = vcmask 0
      %26 = vst.msk [vmem:[#allocation5] sm:$0x1] %vm25, 0.0
    $region13: #{tpu_custom_call.1} parent=1 // pred_fallthru
      _
    %v27 = vld [vmem:[#allocation2] sm:$0xff]
    %v28 = vld [vmem:[#allocation2 + $0x8] sm:$0xff]
    %v29 = vld [vmem:[#allocation2 + $0x10] sm:$0xff]
    %v30 = vld [vmem:[#allocation2 + $0x18] sm:$0xff]
    %v31 = vld [vmem:[#allocation2 + $0x20] sm:$0xff]
    %v32 = vld [vmem:[#allocation2 + $0x28] sm:$0xff]
    %v33 = vld [vmem:[#allocation2 + $0x30] sm:$0xff]
    %v34 = vld [vmem:[#allocation2 + $0x38] sm:$0xff]
    %v43 = vcombine.high %v27, %v27
    %v44 = vcombine.high %v28, %v28
    %v45 = vcombine.high %v29, %v29
    %v46 = vcombine.high %v30, %v30
    %v47 = vcombine.high %v31, %v31
    %v48 = vcombine.high %v32, %v32
    %v49 = vcombine.high %v33, %v33
    %v50 = vcombine.high %v34, %v34
    %vm59 = vcmask 1043456
    %v60 = vsel %vm59, %v27, 0.0
    %v61 = vrot.slane %v60, 4
    %v62 = vadd.f32 %v60, %v61
    %v63 = vrot.slane %v62, 2
    %v64 = vadd.f32 %v62, %v63
    %v65 = vrot.slane %v64, 1
    %v66 = vadd.f32 %v64, %v65
    %v67 = vsel %vm59, %v43, 0.0
    %v68 = vrot.slane %v67, 4
    %v69 = vadd.f32 %v67, %v68
    %v70 = vrot.slane %v69, 2
    %v71 = vadd.f32 %v69, %v70
    %v72 = vrot.slane %v71, 1
    %v73 = vadd.f32 %v71, %v72
    %v74 = vsel %vm59, %v28, 0.0
    %v75 = vrot.slane %v74, 4
    %v76 = vadd.f32 %v74, %v75
    %v77 = vrot.slane %v76, 2
    %v78 = vadd.f32 %v76, %v77
    %v79 = vrot.slane %v78, 1
    %v80 = vadd.f32 %v78, %v79
    %v81 = vsel %vm59, %v44, 0.0
    %v82 = vrot.slane %v81, 4
    %v83 = vadd.f32 %v81, %v82
    %v84 = vrot.slane %v83, 2
    %v85 = vadd.f32 %v83, %v84
    %v86 = vrot.slane %v85, 1
    %v87 = vadd.f32 %v85, %v86
    %v88 = vsel %vm59, %v29, 0.0
    %v89 = vrot.slane %v88, 4
    %v90 = vadd.f32 %v88, %v89
    %v91 = vrot.slane %v90, 2
    %v92 = vadd.f32 %v90, %v91
    %v93 = vrot.slane %v92, 1
    %v94 = vadd.f32 %v92, %v93
    %v95 = vsel %vm59, %v45, 0.0
    %v96 = vrot.slane %v95, 4
    %v97 = vadd.f32 %v95, %v96
    %v98 = vrot.slane %v97, 2
    %v99 = vadd.f32 %v97, %v98
    %v100 = vrot.slane %v99, 1
    %v101 = vadd.f32 %v99, %v100
    %v102 = vsel %vm59, %v30, 0.0
    %v103 = vrot.slane %v102, 4
    %v104 = vadd.f32 %v102, %v103
    %v105 = vrot.slane %v104, 2
    %v106 = vadd.f32 %v104, %v105
    %v107 = vrot.slane %v106, 1
    %v108 = vadd.f32 %v106, %v107
    %v109 = vsel %vm59, %v46, 0.0
    %v110 = vrot.slane %v109, 4
    %v111 = vadd.f32 %v109, %v110
    %v112 = vrot.slane %v111, 2
    %v113 = vadd.f32 %v111, %v112
    %v114 = vrot.slane %v113, 1
    %v115 = vadd.f32 %v113, %v114
    %v116 = vsel %vm59, %v31, 0.0
    %v117 = vrot.slane %v116, 4
    %v118 = vadd.f32 %v116, %v117
    %v119 = vrot.slane %v118, 2
    %v120 = vadd.f32 %v118, %v119
    %v121 = vrot.slane %v120, 1
    %v122 = vadd.f32 %v120, %v121
    %v123 = vsel %vm59, %v47, 0.0
    %v124 = vrot.slane %v123, 4
    %v125 = vadd.f32 %v123, %v124
    %v126 = vrot.slane %v125, 2
    %v127 = vadd.f32 %v125, %v126
    %v128 = vrot.slane %v127, 1
    %v129 = vadd.f32 %v127, %v128
    %v130 = vsel %vm59, %v32, 0.0
    %v131 = vrot.slane %v130, 4
    %v132 = vadd.f32 %v130, %v131
    %v133 = vrot.slane %v132, 2
    %v134 = vadd.f32 %v132, %v133
    %v135 = vrot.slane %v134, 1
    %v136 = vadd.f32 %v134, %v135
    %v137 = vsel %vm59, %v48, 0.0
    %v138 = vrot.slane %v137, 4
    %v139 = vadd.f32 %v137, %v138
    %v140 = vrot.slane %v139, 2
    %v141 = vadd.f32 %v139, %v140
    %v142 = vrot.slane %v141, 1
    %v143 = vadd.f32 %v141, %v142
    %v144 = vsel %vm59, %v33, 0.0
    %v145 = vrot.slane %v144, 4
    %v146 = vadd.f32 %v144, %v145
    %v147 = vrot.slane %v146, 2
    %v148 = vadd.f32 %v146, %v147
    %v149 = vrot.slane %v148, 1
    %v150 = vadd.f32 %v148, %v149
    %v151 = vsel %vm59, %v49, 0.0
    %v152 = vrot.slane %v151, 4
    %v153 = vadd.f32 %v151, %v152
    %v154 = vrot.slane %v153, 2
    %v155 = vadd.f32 %v153, %v154
    %v156 = vrot.slane %v155, 1
    %v157 = vadd.f32 %v155, %v156
    %v158 = vsel %vm59, %v34, 0.0
    %v159 = vrot.slane %v158, 4
    %v160 = vadd.f32 %v158, %v159
    %v161 = vrot.slane %v160, 2
    %v162 = vadd.f32 %v160, %v161
    %v163 = vrot.slane %v162, 1
    %v164 = vadd.f32 %v162, %v163
    %v165 = vsel %vm59, %v50, 0.0
    %v166 = vrot.slane %v165, 4
    %v167 = vadd.f32 %v165, %v166
    %v168 = vrot.slane %v167, 2
    %v169 = vadd.f32 %v167, %v168
    %v170 = vrot.slane %v169, 1
    %v171 = vadd.f32 %v169, %v170
    %v172 = vrcp.pop 4.0
    %v173 = vmul.f32 %v66, %v172
    %v174 = vmul.f32 %v73, %v172
    %v175 = vmul.f32 %v80, %v172
    %v176 = vmul.f32 %v87, %v172
    %v177 = vmul.f32 %v94, %v172
    %v178 = vmul.f32 %v101, %v172
    %v179 = vmul.f32 %v108, %v172
    %v180 = vmul.f32 %v115, %v172
    %v181 = vmul.f32 %v122, %v172
    %v182 = vmul.f32 %v129, %v172
    %v183 = vmul.f32 %v136, %v172
    %v184 = vmul.f32 %v143, %v172
    %v185 = vmul.f32 %v150, %v172
    %v186 = vmul.f32 %v157, %v172
    %v187 = vmul.f32 %v164, %v172
    %v188 = vmul.f32 %v171, %v172
    %v205 = vcombine.low %v173, %v174
    %v206 = vcombine.low %v175, %v176
    %v207 = vcombine.low %v177, %v178
    %v208 = vcombine.low %v179, %v180
    %v209 = vcombine.low %v181, %v182
    %v210 = vcombine.low %v183, %v184
    %v211 = vcombine.low %v185, %v186
    %v212 = vcombine.low %v187, %v188
    %v221 = vsub.f32 %v27, %v205
    %v222 = vsub.f32 %v28, %v206
    %v223 = vsub.f32 %v29, %v207
    %v224 = vsub.f32 %v30, %v208
    %v225 = vsub.f32 %v31, %v209
    %v226 = vsub.f32 %v32, %v210
    %v227 = vsub.f32 %v33, %v211
    %v228 = vsub.f32 %v34, %v212
    %v229 = vmul.f32 %v221, %v221
    %v230 = vmul.f32 %v222, %v222
    %v231 = vmul.f32 %v223, %v223
    %v232 = vmul.f32 %v224, %v224
    %v233 = vmul.f32 %v225, %v225
    %v234 = vmul.f32 %v226, %v226
    %v235 = vmul.f32 %v227, %v227
    %v236 = vmul.f32 %v228, %v228
    %v245 = vcombine.high %v229, %v229
    %v246 = vcombine.high %v230, %v230
    %v247 = vcombine.high %v231, %v231
    %v248 = vcombine.high %v232, %v232
    %v249 = vcombine.high %v233, %v233
    %v250 = vcombine.high %v234, %v234
    %v251 = vcombine.high %v235, %v235
    %v252 = vcombine.high %v236, %v236
    %v261 = vsel %vm59, %v229, 0.0
    %v262 = vrot.slane %v261, 4
    %v263 = vadd.f32 %v261, %v262
    %v264 = vrot.slane %v263, 2
    %v265 = vadd.f32 %v263, %v264
    %v266 = vrot.slane %v265, 1
    %v267 = vadd.f32 %v265, %v266
    %v268 = vsel %vm59, %v245, 0.0
    %v269 = vrot.slane %v268, 4
    %v270 = vadd.f32 %v268, %v269
    %v271 = vrot.slane %v270, 2
    %v272 = vadd.f32 %v270, %v271
    %v273 = vrot.slane %v272, 1
    %v274 = vadd.f32 %v272, %v273
    %v275 = vsel %vm59, %v230, 0.0
    %v276 = vrot.slane %v275, 4
    %v277 = vadd.f32 %v275, %v276
    %v278 = vrot.slane %v277, 2
    %v279 = vadd.f32 %v277, %v278
    %v280 = vrot.slane %v279, 1
    %v281 = vadd.f32 %v279, %v280
    %v282 = vsel %vm59, %v246, 0.0
    %v283 = vrot.slane %v282, 4
    %v284 = vadd.f32 %v282, %v283
    %v285 = vrot.slane %v284, 2
    %v286 = vadd.f32 %v284, %v285
    %v287 = vrot.slane %v286, 1
    %v288 = vadd.f32 %v286, %v287
    %v289 = vsel %vm59, %v231, 0.0
    %v290 = vrot.slane %v289, 4
    %v291 = vadd.f32 %v289, %v290
    %v292 = vrot.slane %v291, 2
    %v293 = vadd.f32 %v291, %v292
    %v294 = vrot.slane %v293, 1
    %v295 = vadd.f32 %v293, %v294
    %v296 = vsel %vm59, %v247, 0.0
    %v297 = vrot.slane %v296, 4
    %v298 = vadd.f32 %v296, %v297
    %v299 = vrot.slane %v298, 2
    %v300 = vadd.f32 %v298, %v299
    %v301 = vrot.slane %v300, 1
    %v302 = vadd.f32 %v300, %v301
    %v303 = vsel %vm59, %v232, 0.0
    %v304 = vrot.slane %v303, 4
    %v305 = vadd.f32 %v303, %v304
    %v306 = vrot.slane %v305, 2
    %v307 = vadd.f32 %v305, %v306
    %v308 = vrot.slane %v307, 1
    %v309 = vadd.f32 %v307, %v308
    %v310 = vsel %vm59, %v248, 0.0
    %v311 = vrot.slane %v310, 4
    %v312 = vadd.f32 %v310, %v311
    %v313 = vrot.slane %v312, 2
    %v314 = vadd.f32 %v312, %v313
    %v315 = vrot.slane %v314, 1
    %v316 = vadd.f32 %v314, %v315
    %v317 = vsel %vm59, %v233, 0.0
    %v318 = vrot.slane %v317, 4
    %v319 = vadd.f32 %v317, %v318
    %v320 = vrot.slane %v319, 2
    %v321 = vadd.f32 %v319, %v320
    %v322 = vrot.slane %v321, 1
    %v323 = vadd.f32 %v321, %v322
    %v324 = vsel %vm59, %v249, 0.0
    %v325 = vrot.slane %v324, 4
    %v326 = vadd.f32 %v324, %v325
    %v327 = vrot.slane %v326, 2
    %v328 = vadd.f32 %v326, %v327
    %v329 = vrot.slane %v328, 1
    %v330 = vadd.f32 %v328, %v329
    %v331 = vsel %vm59, %v234, 0.0
    %v332 = vrot.slane %v331, 4
    %v333 = vadd.f32 %v331, %v332
    %v334 = vrot.slane %v333, 2
    %v335 = vadd.f32 %v333, %v334
    %v336 = vrot.slane %v335, 1
    %v337 = vadd.f32 %v335, %v336
    %v338 = vsel %vm59, %v250, 0.0
    %v339 = vrot.slane %v338, 4
    %v340 = vadd.f32 %v338, %v339
    %v341 = vrot.slane %v340, 2
    %v342 = vadd.f32 %v340, %v341
    %v343 = vrot.slane %v342, 1
    %v344 = vadd.f32 %v342, %v343
    %v345 = vsel %vm59, %v235, 0.0
    %v346 = vrot.slane %v345, 4
    %v347 = vadd.f32 %v345, %v346
    %v348 = vrot.slane %v347, 2
    %v349 = vadd.f32 %v347, %v348
    %v350 = vrot.slane %v349, 1
    %v351 = vadd.f32 %v349, %v350
    %v352 = vsel %vm59, %v251, 0.0
    %v353 = vrot.slane %v352, 4
    %v354 = vadd.f32 %v352, %v353
    %v355 = vrot.slane %v354, 2
    %v356 = vadd.f32 %v354, %v355
    %v357 = vrot.slane %v356, 1
    %v358 = vadd.f32 %v356, %v357
    %v359 = vsel %vm59, %v236, 0.0
    %v360 = vrot.slane %v359, 4
    %v361 = vadd.f32 %v359, %v360
    %v362 = vrot.slane %v361, 2
    %v363 = vadd.f32 %v361, %v362
    %v364 = vrot.slane %v363, 1
    %v365 = vadd.f32 %v363, %v364
    %v366 = vsel %vm59, %v252, 0.0
    %v367 = vrot.slane %v366, 4
    %v368 = vadd.f32 %v366, %v367
    %v369 = vrot.slane %v368, 2
    %v370 = vadd.f32 %v368, %v369
    %v371 = vrot.slane %v370, 1
    %v372 = vadd.f32 %v370, %v371
    %v373 = vmul.f32 %v267, 0.33333334
    %v374 = vmul.f32 %v274, 0.33333334
    %v375 = vmul.f32 %v281, 0.33333334
    %v376 = vmul.f32 %v288, 0.33333334
    %v377 = vmul.f32 %v295, 0.33333334
    %v378 = vmul.f32 %v302, 0.33333334
    %v379 = vmul.f32 %v309, 0.33333334
    %v380 = vmul.f32 %v316, 0.33333334
    %v381 = vmul.f32 %v323, 0.33333334
    %v382 = vmul.f32 %v330, 0.33333334
    %v383 = vmul.f32 %v337, 0.33333334
    %v384 = vmul.f32 %v344, 0.33333334
    %v385 = vmul.f32 %v351, 0.33333334
    %v386 = vmul.f32 %v358, 0.33333334
    %v387 = vmul.f32 %v365, 0.33333334
    %v388 = vmul.f32 %v372, 0.33333334
    %v389 = vadd.f32 %v373, 1e-08
    %v390 = vadd.f32 %v374, 1e-08
    %v391 = vadd.f32 %v375, 1e-08
    %v392 = vadd.f32 %v376, 1e-08
    %v393 = vadd.f32 %v377, 1e-08
    %v394 = vadd.f32 %v378, 1e-08
    %v395 = vadd.f32 %v379, 1e-08
    %v396 = vadd.f32 %v380, 1e-08
    %v397 = vadd.f32 %v381, 1e-08
    %v398 = vadd.f32 %v382, 1e-08
    %v399 = vadd.f32 %v383, 1e-08
    %v400 = vadd.f32 %v384, 1e-08
    %v401 = vadd.f32 %v385, 1e-08
    %v402 = vadd.f32 %v386, 1e-08
    %v403 = vadd.f32 %v387, 1e-08
    %v404 = vadd.f32 %v388, 1e-08
    %v405 = vrsqrt.pop %v389
    %v406 = vmul.f32 %v389, %v405
    %vm407 = vcmp.eq.f32.partialorder %v389, inf
    %v408 = vsel %vm407, %v389, %v406
    %vm409 = vcmp.eq.f32.partialorder %v389, 0.0
    %v410 = vand.u32 %v389, 2147483648
    %v411 = vsel %vm409, %v410, %v408
    %v412 = vrsqrt.pop %v390
    %v413 = vmul.f32 %v390, %v412
    %vm414 = vcmp.eq.f32.partialorder %v390, inf
    %v415 = vsel %vm414, %v390, %v413
    %vm416 = vcmp.eq.f32.partialorder %v390, 0.0
    %v417 = vand.u32 %v390, 2147483648
    %v418 = vsel %vm416, %v417, %v415
    %v419 = vrsqrt.pop %v391
    %v420 = vmul.f32 %v391, %v419
    %vm421 = vcmp.eq.f32.partialorder %v391, inf
    %v422 = vsel %vm421, %v391, %v420
    %vm423 = vcmp.eq.f32.partialorder %v391, 0.0
    %v424 = vand.u32 %v391, 2147483648
    %v425 = vsel %vm423, %v424, %v422
    %v426 = vrsqrt.pop %v392
    %v427 = vmul.f32 %v392, %v426
    %vm428 = vcmp.eq.f32.partialorder %v392, inf
    %v429 = vsel %vm428, %v392, %v427
    %vm430 = vcmp.eq.f32.partialorder %v392, 0.0
    %v431 = vand.u32 %v392, 2147483648
    %v432 = vsel %vm430, %v431, %v429
    %v433 = vrsqrt.pop %v393
    %v434 = vmul.f32 %v393, %v433
    %vm435 = vcmp.eq.f32.partialorder %v393, inf
    %v436 = vsel %vm435, %v393, %v434
    %vm437 = vcmp.eq.f32.partialorder %v393, 0.0
    %v438 = vand.u32 %v393, 2147483648
    %v439 = vsel %vm437, %v438, %v436
    %v440 = vrsqrt.pop %v394
    %v441 = vmul.f32 %v394, %v440
    %vm442 = vcmp.eq.f32.partialorder %v394, inf
    %v443 = vsel %vm442, %v394, %v441
    %vm444 = vcmp.eq.f32.partialorder %v394, 0.0
    %v445 = vand.u32 %v394, 2147483648
    %v446 = vsel %vm444, %v445, %v443
    %v447 = vrsqrt.pop %v395
    %v448 = vmul.f32 %v395, %v447
    %vm449 = vcmp.eq.f32.partialorder %v395, inf
    %v450 = vsel %vm449, %v395, %v448
    %vm451 = vcmp.eq.f32.partialorder %v395, 0.0
    %v452 = vand.u32 %v395, 2147483648
    %v453 = vsel %vm451, %v452, %v450
    %v454 = vrsqrt.pop %v396
    %v455 = vmul.f32 %v396, %v454
    %vm456 = vcmp.eq.f32.partialorder %v396, inf
    %v457 = vsel %vm456, %v396, %v455
    %vm458 = vcmp.eq.f32.partialorder %v396, 0.0
    %v459 = vand.u32 %v396, 2147483648
    %v460 = vsel %vm458, %v459, %v457
    %v461 = vrsqrt.pop %v397
    %v462 = vmul.f32 %v397, %v461
    %vm463 = vcmp.eq.f32.partialorder %v397, inf
    %v464 = vsel %vm463, %v397, %v462
    %vm465 = vcmp.eq.f32.partialorder %v397, 0.0
    %v466 = vand.u32 %v397, 2147483648
    %v467 = vsel %vm465, %v466, %v464
    %v468 = vrsqrt.pop %v398
    %v469 = vmul.f32 %v398, %v468
    %vm470 = vcmp.eq.f32.partialorder %v398, inf
    %v471 = vsel %vm470, %v398, %v469
    %vm472 = vcmp.eq.f32.partialorder %v398, 0.0
    %v473 = vand.u32 %v398, 2147483648
    %v474 = vsel %vm472, %v473, %v471
    %v475 = vrsqrt.pop %v399
    %v476 = vmul.f32 %v399, %v475
    %vm477 = vcmp.eq.f32.partialorder %v399, inf
    %v478 = vsel %vm477, %v399, %v476
    %vm479 = vcmp.eq.f32.partialorder %v399, 0.0
    %v480 = vand.u32 %v399, 2147483648
    %v481 = vsel %vm479, %v480, %v478
    %v482 = vrsqrt.pop %v400
    %v483 = vmul.f32 %v400, %v482
    %vm484 = vcmp.eq.f32.partialorder %v400, inf
    %v485 = vsel %vm484, %v400, %v483
    %vm486 = vcmp.eq.f32.partialorder %v400, 0.0
    %v487 = vand.u32 %v400, 2147483648
    %v488 = vsel %vm486, %v487, %v485
    %v489 = vrsqrt.pop %v401
    %v490 = vmul.f32 %v401, %v489
    %vm491 = vcmp.eq.f32.partialorder %v401, inf
    %v492 = vsel %vm491, %v401, %v490
    %vm493 = vcmp.eq.f32.partialorder %v401, 0.0
    %v494 = vand.u32 %v401, 2147483648
    %v495 = vsel %vm493, %v494, %v492
    %v496 = vrsqrt.pop %v402
    %v497 = vmul.f32 %v402, %v496
    %vm498 = vcmp.eq.f32.partialorder %v402, inf
    %v499 = vsel %vm498, %v402, %v497
    %vm500 = vcmp.eq.f32.partialorder %v402, 0.0
    %v501 = vand.u32 %v402, 2147483648
    %v502 = vsel %vm500, %v501, %v499
    %v503 = vrsqrt.pop %v403
    %v504 = vmul.f32 %v403, %v503
    %vm505 = vcmp.eq.f32.partialorder %v403, inf
    %v506 = vsel %vm505, %v403, %v504
    %vm507 = vcmp.eq.f32.partialorder %v403, 0.0
    %v508 = vand.u32 %v403, 2147483648
    %v509 = vsel %vm507, %v508, %v506
    %v510 = vrsqrt.pop %v404
    %v511 = vmul.f32 %v404, %v510
    %vm512 = vcmp.eq.f32.partialorder %v404, inf
    %v513 = vsel %vm512, %v404, %v511
    %vm514 = vcmp.eq.f32.partialorder %v404, 0.0
    %v515 = vand.u32 %v404, 2147483648
    %v516 = vsel %vm514, %v515, %v513
    %v517 = vld [vmem:[#allocation5] sm:$0x1]
    %v518 = vadd.f32 %v411, %v418
    %v519 = vadd.f32 %v518, %v425
    %v520 = vadd.f32 %v519, %v432
    %v521 = vadd.f32 %v520, %v439
    %v522 = vadd.f32 %v521, %v446
    %v523 = vadd.f32 %v522, %v453
    %v524 = vadd.f32 %v523, %v460
    %v525 = vadd.f32 %v524, %v467
    %v526 = vadd.f32 %v525, %v474
    %v527 = vadd.f32 %v526, %v481
    %v528 = vadd.f32 %v527, %v488
    %v529 = vadd.f32 %v528, %v495
    %v530 = vadd.f32 %v529, %v502
    %v531 = vadd.f32 %v530, %v509
    %v532 = vadd.f32 %v531, %v516
    %533 = vadd.xlane.f32.xlu0 %v532
    %v534 = vpop.xlane.xlu0 %533
    %v535 = vadd.f32 %v517, %v534
    %vm536 = vcmask 0
    %537 = vst.msk [vmem:[#allocation5] sm:$0x1] %vm536, %v535
    // Predicated region
    $region14: #{tpu_custom_call.1} parent=1 // pred_check
      %p538 = pneg %p21
    $region15: #{tpu_custom_call.1} parent=1 // pred_check_branch
      %540 = sbr.rel (%p538) target = $region17
    $region16: #{tpu_custom_call.1} parent=1 // pred_region
      %v541 = vld [vmem:[#allocation5] sm:$0x1]
      %v542 = vmul.f32 %v541, 0.00048828125
      %543 = vst.msk [vmem:[#allocation5] sm:$0x1] %vm536, %v542
    $region17: #{tpu_custom_call.1} parent=1 // pred_fallthru
      _
    // Predicated region
    $region18: #{tpu_custom_call.1} parent=1 // pred_check
      _
    $region19: #{tpu_custom_call.1} parent=1 // pred_check_branch
      %545 = sbr.rel (0) target = $region21
    $region20: #{tpu_custom_call.1} parent=1 // pred_region
      %s547 = ssub.s32 16, 16
      %548 = vsyncadd [#allocation4], %s547
      %s550 = sshll.u32 [#allocation5], 4
      %s551 = int_to_ptr.vmem [resolvable:$true] %s550
      %553 = dma.vmem_to_hbm [thread:$0]  %s551, 16, %s1, [#allocation4]
    $region21: #{tpu_custom_call.1} parent=1 // pred_fallthru
      _
    // Predicated region
    $region22: #{tpu_custom_call.1} parent=1 // pred_check
      _
    $region23: #{tpu_custom_call.1} parent=1 // pred_check_branch
      %555 = sbr.rel (0) target = $region25
    $region24: #{tpu_custom_call.1} parent=1 // pred_region
      %556 = dma.done [#allocation4], 16
    $region25: #{tpu_custom_call.1} parent=1 // pred_fallthru
      _
    %557 = vsyncpa [#allocation3], 1
    %558 = vsyncpa [#allocation4], 1

</llo_original>
